<compile_context>
chip_gen: v6e
topology: v6e:2x2x1
jax: 0.10.0
libtpu: 0.0.40
codegen_flags: <defaults>
</compile_context>

<pallas_src>
import math
import functools
from collections import Counter

import numpy as np
import jax
import jax.numpy as jnp
from jax import lax
from jax.experimental import pallas as pl
from jax.experimental.pallas import tpu as pltpu

ALPHA = math.pi ** 2 / 8.0
_INV_SQRT2 = 1.0 / math.sqrt(2.0)
_VMEM_LIMIT = 32 * 1024 * 1024       # raise scoped VMEM (v5e default is only 16 MiB)


def _erf_approx(x):
    # TODO(synk): erf has no guaranteed Mosaic lowering; Abramowitz & Stegun 7.1.26
    # (max abs err ~1.5e-7, well below the 1e-6 clamps) built from exp/abs/where.
    # The 1/(1+p|x|) term stays an exact divide to protect the polynomial accuracy.
    p = 0.3275911
    a1, a2, a3, a4, a5 = (0.254829592, -0.284496736, 1.421413741,
                          -1.453152027, 1.061405429)
    ax = jnp.abs(x)
    t = 1.0 / (1.0 + p * ax)
    poly = ((((a5 * t + a4) * t + a3) * t + a2) * t + a1) * t
    y = 1.0 - poly * jnp.exp(-ax * ax)
    return jnp.where(x >= 0.0, y, -y)


# ---------------------------------------------------------------------------
# Kernel A0: feature extractor (single linear A->A) + fc head.  Tiny; gridless.
# Weights pre-transposed so both MXU matmuls contract (1,0) with no in-kernel transpose.
# ---------------------------------------------------------------------------
def head_kernel(x_ref, wm_t_ref, bm_ref, wfc_t_ref, bfc_ref, y_ref, featl_ref, *, n_l):
    feat = jnp.dot(x_ref[...], wm_t_ref[...],
                   preferred_element_type=jnp.float32) + bm_ref[...]
    y_ref[...] = jnp.dot(feat, wfc_t_ref[...],
                         preferred_element_type=jnp.float32) + bfc_ref[...]
    featl_ref[...] = feat[0:n_l, :]            # labeled features for the CV update


def head_forward(x_, wm_t, bm, wfc_t, bfc, *, n_l):
    n, a = x_.shape
    c = wfc_t.shape[1]
    return pl.pallas_call(
        functools.partial(head_kernel, n_l=n_l),
        out_shape=(jax.ShapeDtypeStruct((n, c), jnp.float32),     # logits y
                   jax.ShapeDtypeStruct((n_l, a), jnp.float32)),  # feat[:n_l]
        compiler_params=pltpu.CompilerParams(vmem_limit_bytes=_VMEM_LIMIT),
    )(x_, wm_t, bm.reshape(1, a), wfc_t, bfc.reshape(1, c))


# ---------------------------------------------------------------------------
# Kernel A1: EstimatorCV.update_CV + Q[c] = W Cov[c] W^T, gridded over class tiles.
# ---------------------------------------------------------------------------
def cv_q_kernel(lab_ref, featl_ref, wfct_ref, cov_old_ref, ave_old_ref, amt_old_ref,
                cov_new_ref, ave_new_ref, amt_new_ref, q_ref, qd_ref,
                *, feat_num, class_num, tc):
    A, C = feat_num, class_num
    lab = lab_ref[...]                                            # (Tc, N_l)
    f = featl_ref[...]                                            # (N_l, A)

    # --- EstimatorCV.update_CV for this class tile --------------------------------
    sum_w = jnp.sum(lab, axis=1, keepdims=True)                   # (Tc, 1)
    amt_safe = jnp.where(sum_w == 0.0, 1.0, sum_w)
    sum_f = jnp.dot(lab, f, preferred_element_type=jnp.float32)   # (Tc, A)
    ave = sum_f / amt_safe
    # centered, label-weighted second moment; the class grid bounds this to (Tc,N_l,A)
    # (an uncentered (C,N_l)@(N_l,A*A) flat matmul is an option for very large C).
    vt = lab[:, :, None] * (f[None, :, :] - ave[:, None, :])
    var_sum = lax.dot_general(vt, vt, (((1,), (1,)), ((0,), (0,))),
                              preferred_element_type=jnp.float32)  # (Tc, A, A)
    var = var_sum / amt_safe[:, :, None]

    amt_old = amt_old_ref[...]                                    # (Tc, 1)
    denom = sum_w + amt_old
    w = jnp.where(denom == 0.0, 0.0,
                  sum_w / jnp.where(denom == 0.0, 1.0, denom))    # NaN -> 0
    ave_old = ave_old_ref[...]
    d = ave_old - ave
    add_cv = (w * (1.0 - w))[:, :, None] * (d[:, :, None] * d[:, None, :])
    cov_new = (cov_old_ref[...] * (1.0 - w[:, :, None])
               + var * w[:, :, None] + add_cv)
    cov_new_ref[...] = cov_new
    ave_new_ref[...] = ave_old * (1.0 - w) + ave * w
    amt_new_ref[...] = amt_old + sum_w

    # --- Q[c] = W Cov[c] W^T --------------------------------------------------------
    wt = wfct_ref[...]                                            # (A, C)
    # first contraction as one flat 2D MXU matmul (no broadcast temporaries)
    tmat = jnp.dot(cov_new.reshape(tc * A, A), wt,
                   preferred_element_type=jnp.float32).reshape(tc, A, C)
    # diag(Q) straight off the intermediate: qd[l,i] = sum_a tmat[l,a,i] * W[i,a]
    qd_ref[...] = jnp.sum(tmat * wt[None, :, :], axis=1)          # (Tc, C)
    # second contraction batched over the class tile (small W^T broadcast);
    # result is W_i Cov_l W_j^T -- used symmetrically downstream (diag forced to 0).
    wt_b = jnp.broadcast_to(wt[None, :, :], (tc, A, C))
    q_ref[...] = lax.dot_general(tmat, wt_b, (((1,), (1,)), ((0,), (0,))),
                                 preferred_element_type=jnp.float32)  # (Tc, C, C)


def cv_q_update(feat_l, lab_t, wfc_t, cov_old, ave_old, amt_old):
    n_l, a = feat_l.shape
    c = ave_old.shape[0]
    tc = 8 if c % 8 == 0 else c        # class tile (fallback: single block)
    grid = (c // tc,)
    return pl.pallas_call(
        functools.partial(cv_q_kernel, feat_num=a, class_num=c, tc=tc),
        grid=grid,
        in_specs=[pl.BlockSpec((tc, n_l), lambda t: (t, 0)),        # labels^T
                  pl.BlockSpec((n_l, a), lambda t: (0, 0)),         # feat_l (resident)
                  pl.BlockSpec((a, c), lambda t: (0, 0)),           # W^T (resident)
                  pl.BlockSpec((tc, a, a), lambda t: (t, 0, 0)),    # Cov old
                  pl.BlockSpec((tc, a), lambda t: (t, 0)),          # Ave old
                  pl.BlockSpec((tc, 1), lambda t: (t, 0))],         # Amount old
        out_specs=(pl.BlockSpec((tc, a, a), lambda t: (t, 0, 0)),
                   pl.BlockSpec((tc, a), lambda t: (t, 0)),
                   pl.BlockSpec((tc, 1), lambda t: (t, 0)),
                   pl.BlockSpec((tc, c, c), lambda t: (t, 0, 0)),
                   pl.BlockSpec((tc, c), lambda t: (t, 0))),
        out_shape=(jax.ShapeDtypeStruct((c, a, a), jnp.float32),    # CoVariance
                   jax.ShapeDtypeStruct((c, a), jnp.float32),       # Ave
                   jax.ShapeDtypeStruct((c, 1), jnp.float32),       # Amount
                   jax.ShapeDtypeStruct((c, c, c), jnp.float32),    # Q
                   jax.ShapeDtypeStruct((c, c), jnp.float32)),      # diag(Q)
        compiler_params=pltpu.CompilerParams(
            dimension_semantics=("parallel",),
            vmem_limit_bytes=_VMEM_LIMIT),
    )(lab_t, feat_l, wfc_t, cov_old, ave_old, amt_old)


# ---------------------------------------------------------------------------
# Kernel B: fused label-argmax + Q gather + ISDA aug / aug1 + masks + loss sums,
# gridded over paired batch tiles (labeled tile + matching u_w/u_s tile per step).
# ---------------------------------------------------------------------------
def fused_isda_loss_kernel(yl_ref, yuw_ref, yus_ref, ptl_ref, pal_ref, pau_ref,
                           acc_ref, qflat_ref, qdiag_ref,
                           aug1_ref, loss_ref,
                           *, n_l, n_u, class_num, tile_n, ratio, p_cutoff):
    C, TN = class_num, tile_n
    t = pl.program_id(0)
    row = lax.broadcasted_iota(jnp.int32, (TN, 1), 0) + t * TN
    valid_l = (row < n_l).astype(jnp.float32)                     # (TN, 1)
    valid_u = (row < n_u).astype(jnp.float32)

    qflat = qflat_ref[...]                                        # (C, C*C), resident
    qdiag = qdiag_ref[...]                                        # (C, C),   resident
    off_diag = 1.0 - (lax.broadcasted_iota(jnp.int32, (C, C), 0)
                      == lax.broadcasted_iota(jnp.int32, (C, C), 1)).astype(jnp.float32)

    def first_argmax_onehot(scores):                              # (TN, C) -> one-hot
        m = jnp.max(scores, axis=-1, keepdims=True)
        lane = lax.broadcasted_iota(jnp.int32, scores.shape, 1)
        idx = jnp.min(jnp.where(scores == m, lane, C), axis=-1, keepdims=True)
        return (lane == idx).astype(jnp.float32)

    def gather_sigma2(onehot):
        # per-sample Q rows via one-hot MXU matmuls (no HBM (N,C,C) materialization)
        qg = jnp.dot(onehot, qflat,
                     preferred_element_type=jnp.float32).reshape(TN, C, C)
        qd = jnp.dot(onehot, qdiag, preferred_element_type=jnp.float32)   # (TN, C)
        s2 = ratio * (qd[:, :, None] + qd[:, None, :] - 2.0 * qg)
        return s2 * off_diag[None, :, :]        # diagonal exactly 0, as in reference

    def softmax_diag(y_blk, s2):
        z = y_blk[:, None, :] + 0.5 * s2
        m = jnp.max(z, axis=-1)                                   # (TN, C)
        den = jnp.sum(jnp.exp(z - m[:, :, None]), axis=-1)
        num = jnp.exp(y_blk - m)                # diag(z) == y since diag(s2) == 0
        return jnp.clip(num * pl.reciprocal(den, approx=True), 1e-6, 1.0 - 1e-6)

    # --- labeled rows -------------------------------------------------------------
    y_l, ptl, pal = yl_ref[...], ptl_ref[...], pal_ref[...]
    aug_l = softmax_diag(y_l, gather_sigma2(first_argmax_onehot(ptl)))
    labeled_sum = jnp.sum(valid_l * jnp.sum(ptl * jnp.log(aug_l),
                                            axis=-1, keepdims=True))
    cl_sum = jnp.sum(valid_l * jnp.sum((1.0 - pal) * jnp.log(1.0000001 - aug_l),
                                       axis=-1, keepdims=True))

    # --- unlabeled rows (weak / strong pair share one sigma2) -----------------------
    y_uw, y_us, pu = yuw_ref[...], yus_ref[...], pau_ref[...]
    s2_u = gather_sigma2(first_argmax_onehot(y_uw * jnp.abs(y_uw - 1.0) * pu))
    aug_uw = softmax_diag(y_uw, s2_u)
    aug_us = softmax_diag(y_us, s2_u)
    cl_sum = cl_sum + jnp.sum(
        valid_u * jnp.sum((1.0 - pu) * jnp.log(1.0000001 - aug_uw),
                          axis=-1, keepdims=True))

    # E_a[p] (sigmoid expectation): rsqrt + approx reciprocal relieve the EUP slot
    mu = y_uw[:, :, None] - y_uw[:, None, :]
    arg = (ALPHA * _INV_SQRT2) * mu * lax.rsqrt(1.0 + (ALPHA * ALPHA) * s2_u)
    sig_exp = jnp.clip(0.5 * (1.0 + _erf_approx(arg)), 1e-6, 1.0 - 1e-6)
    recip_sum = jnp.sum(pl.reciprocal(sig_exp, approx=True), axis=-1)      # (TN, C)
    aug1 = jnp.clip(pl.reciprocal(recip_sum - float(C), approx=True),
                    1e-6, 1.0 - 1e-6)
    aug1_ref[...] = aug1

    a1u = aug1 * pu
    w_u = a1u * pl.reciprocal(
        jnp.maximum(jnp.sum(a1u, axis=-1, keepdims=True), 1e-30), approx=True)

    max_probs = jnp.max(aug1, axis=-1, keepdims=True)                      # (TN, 1)
    onehot2 = first_argmax_onehot(aug1)
    acc_sel = jnp.sum(onehot2 * acc_ref[...], axis=-1, keepdims=True)
    mask = (max_probs >= p_cutoff * acc_sel / (2.0 - acc_sel)).astype(jnp.float32)
    # NOTE: reference uses .ge(0.0) so mask1 is identically 1; kept as specified.
    mask1 = (jnp.sum(onehot2 * pu, axis=-1, keepdims=True) >= 0.0).astype(jnp.float32)

    ul = jnp.sum(w_u * jnp.log(aug_us), axis=-1, keepdims=True)
    unlabeled_sum = jnp.sum(ul * mask * mask1 * valid_u)

    # per-step partial loss sums stored as one lane-dense (8, 128) slab
    r8 = lax.broadcasted_iota(jnp.int32, (8, 128), 0)
    l128 = lax.broadcasted_iota(jnp.int32, (8, 128), 1)
    loss_ref[...] = jnp.where((r8 == 0) & (l128 == 0), labeled_sum,
                    jnp.where((r8 == 0) & (l128 == 1), unlabeled_sum,
                    jnp.where((r8 == 0) & (l128 == 2), cl_sum, 0.0)))


def fused_isda_loss(y_l, y_uw, y_us, ptl, pal, pau, acc_row, q_flat, qdiag,
                    *, n_l, n_u, tile_n, ratio, p_cutoff):
    np_, c = y_l.shape
    n_tiles = np_ // tile_n
    blk = lambda t: (t, 0)
    fixed = lambda t: (0, 0)
    return pl.pallas_call(
        functools.partial(fused_isda_loss_kernel, n_l=n_l, n_u=n_u, class_num=c,
                          tile_n=tile_n, ratio=ratio, p_cutoff=p_cutoff),
        grid=(n_tiles,),
        in_specs=[pl.BlockSpec((tile_n, c), blk),      # y labeled
                  pl.BlockSpec((tile_n, c), blk),      # y unlabeled weak
                  pl.BlockSpec((tile_n, c), blk),      # y unlabeled strong
                  pl.BlockSpec((tile_n, c), blk),      # pseudo_target_x_l
                  pl.BlockSpec((tile_n, c), blk),      # partial labeled
                  pl.BlockSpec((tile_n, c), blk),      # partial unlabeled
                  pl.BlockSpec((1, c), fixed),         # classwise_acc (resident)
                  pl.BlockSpec((c, c * c), fixed),     # Q flattened (resident)
                  pl.BlockSpec((c, c), fixed)],        # diag(Q)     (resident)
        out_specs=(pl.BlockSpec((tile_n, c), blk),
                   pl.BlockSpec((8, 128), blk)),
        out_shape=(jax.ShapeDtypeStruct((np_, c), jnp.float32),           # aug1_ori
                   jax.ShapeDtypeStruct((n_tiles * 8, 128), jnp.float32)),  # loss parts
        compiler_params=pltpu.CompilerParams(
            dimension_semantics=("parallel",),
            vmem_limit_bytes=_VMEM_LIMIT),
    )(y_l, y_uw, y_us, ptl, pal, pau, acc_row, q_flat, qdiag)


# ---------------------------------------------------------------------------
# STLoss.forward (glue around the Pallas kernels)
# ---------------------------------------------------------------------------
def st_loss_forward(params, state, x, partial_target_x, pseudo_target_x_l, idx_x,
                    ratio, p_cutoff, threshold_warmup=True):
    wm, bm, wfc, bfc = params['wm'], params['bm'], params['wfc'], params['bfc']
    C = wfc.shape[0]

    # host-side pseudo-label bookkeeping (classwise accuracy) -- glue
    # TODO(synk): host Counter logic keeps this forward un-jittable end to end.
    selected_label = np.asarray(state['selected_label'])
    classwise_acc = np.array(state['classwise_acc'], dtype=np.float32)
    instance_num = selected_label.shape[0]
    pseudo_counter = Counter(selected_label.tolist())
    if max(pseudo_counter.values()) < instance_num:
        if threshold_warmup:
            for i in range(C):
                classwise_acc[i] = pseudo_counter[i] / max(pseudo_counter.values())
        else:
            wo = dict(pseudo_counter)
            wo.pop(-1, None)
            for i in range(C):
                classwise_acc[i] = pseudo_counter[i] / max(wo.values())
    classwise_acc_j = jnp.asarray(classwise_acc)

    x_l, x_u_w, x_u_s = x['l'], x['u_w'], x['u_s']
    n_l, n_u = x_l.shape[0], x_u_w.shape[0]
    x_ = jnp.concatenate([x_l, x_u_w, x_u_s], axis=0)
    partial_l, partial_u = partial_target_x['l'], partial_target_x['u']

    wm_t, wfc_t = wm.T, wfc.T

    # kernel A0: logits + labeled features
    y, feat_l = head_forward(x_, wm_t, bm, wfc_t, bfc, n_l=n_l)

    # kernel A1 (class-gridded, parallel): covariance estimator update + Q precompute
    cov_new, ave_new, amt_new, Q, Qdiag = cv_q_update(
        feat_l, pseudo_target_x_l.T, wfc_t,
        state['CoVariance'], state['Ave'], state['Amount'].reshape(C, 1))
    q_flat = Q.reshape(C, C * C)     # cheap contiguous reshape in HBM

    # pad each batch segment to a common tile count (padded rows masked in-kernel)
    TN = 8
    n_tiles = max(pl.cdiv(n_l, TN), pl.cdiv(n_u, TN))
    NP = n_tiles * TN

    def pad_rows(a, value=0.0):
        return jnp.pad(a, ((0, NP - a.shape[0]), (0, 0)), constant_values=value)

    y_l_p = pad_rows(y[:n_l])
    y_uw_p = pad_rows(y[n_l:n_l + n_u])
    y_us_p = pad_rows(y[n_l + n_u:])
    ptl_p = pad_rows(pseudo_target_x_l)
    pal_p = pad_rows(partial_l, 1.0)
    pau_p = pad_rows(partial_u, 1.0)

    # kernel B: fused label-argmax + Q gather + ISDA aug/aug1 + masks + loss sums
    aug1_p, loss_parts = fused_isda_loss(
        y_l_p, y_uw_p, y_us_p, ptl_p, pal_p, pau_p,
        classwise_acc_j.reshape(1, C), q_flat, Qdiag,
        n_l=n_l, n_u=n_u, tile_n=TN, ratio=ratio, p_cutoff=p_cutoff)

    labeled_loss = -jnp.sum(loss_parts[:, 0]) / n_l
    unlabeled_loss = -jnp.sum(loss_parts[:, 1]) / n_u
    cl_loss = -jnp.sum(loss_parts[:, 2]) / (n_l + n_u)

    # selected_label state update (not part of the returned losses) -- glue
    aug1_ori = aug1_p[:n_u]
    max_probs = jnp.max(aug1_ori, axis=-1)
    pseudo_u2 = jnp.argmax(aug1_ori, axis=-1).astype(jnp.int32)
    select = max_probs >= p_cutoff
    idx_u = idx_x['u']
    sel_j = jnp.asarray(selected_label)
    new_sel = sel_j.at[idx_u].set(
        jnp.where(select, pseudo_u2.astype(sel_j.dtype), sel_j[idx_u]))

    new_state = dict(CoVariance=cov_new, Ave=ave_new, Amount=amt_new.reshape(C),
                     selected_label=new_sel, classwise_acc=classwise_acc_j)
    return (labeled_loss, unlabeled_loss, cl_loss), new_state


# ---------------------------------------------------------------------------
if __name__ == "__main__":
    feature_num = 16     # A
    class_num = 8        # C
    n_l = 4
    n_u = 4
    instance_num = 16
    p_cutoff = 0.95
    ratio = 0.5

    key = jax.random.PRNGKey(0)
    ks = jax.random.split(key, 10)
    x_l = jax.random.normal(ks[0], (n_l, feature_num), dtype=jnp.float32)
    x_u_w = jax.random.normal(ks[1], (n_u, feature_num), dtype=jnp.float32)
    x_u_s = x_u_w + 0.1 * jax.random.normal(ks[2], (n_u, feature_num), dtype=jnp.float32)

    # deterministic synthetic "model" (linear A->A) and fc (A->C) parameters
    wm = jax.random.normal(ks[3], (feature_num, feature_num), dtype=jnp.float32) / math.sqrt(feature_num)
    bm = 0.01 * jax.random.normal(ks[4], (feature_num,), dtype=jnp.float32)
    wfc = jax.random.normal(ks[5], (class_num, feature_num), dtype=jnp.float32) / math.sqrt(feature_num)
    bfc = 0.01 * jax.random.normal(ks[6], (class_num,), dtype=jnp.float32)
    params = dict(wm=wm, bm=bm, wfc=wfc, bfc=bfc)

    true_l = jax.random.randint(ks[7], (n_l,), 0, class_num)
    pseudo_target_x_l = jax.nn.one_hot(true_l, class_num, dtype=jnp.float32)
    true_u = jax.random.randint(ks[8], (n_u,), 0, class_num)
    partial_l = jnp.maximum(
        (jax.random.uniform(ks[9], (n_l, class_num)) < 0.5).astype(jnp.float32),
        pseudo_target_x_l)
    partial_u = jnp.maximum(
        (jax.random.uniform(jax.random.fold_in(key, 99), (n_u, class_num)) < 0.5).astype(jnp.float32),
        jax.nn.one_hot(true_u, class_num, dtype=jnp.float32))

    x = dict(l=x_l, u_w=x_u_w, u_s=x_u_s)
    partial_target_x = dict(l=partial_l, u=partial_u)
    idx_x = dict(l=jnp.arange(n_l, dtype=jnp.int32),
                 u=jnp.arange(n_l, n_l + n_u, dtype=jnp.int32))

    state = dict(
        CoVariance=jnp.zeros((class_num, feature_num, feature_num), jnp.float32),
        Ave=jnp.zeros((class_num, feature_num), jnp.float32),
        Amount=jnp.zeros((class_num,), jnp.float32),
        selected_label=np.full((instance_num,), -1, dtype=np.int32),
        classwise_acc=np.zeros((class_num,), dtype=np.float32),
    )

    (labeled_loss, unlabeled_loss, cl_loss), _ = st_loss_forward(
        params, state, x, partial_target_x, pseudo_target_x_l, idx_x,
        ratio, p_cutoff, threshold_warmup=True)

    jax.block_until_ready((labeled_loss, unlabeled_loss, cl_loss))
    print("KERNEL_OK")
</pallas_src>

<mosaic_0001>
module attributes {stable_mosaic.version = 11 : i64} {
  func.func @head_kernel(%arg0: memref<12x16xf32, #tpu.memory_space<vmem>>, %arg1: memref<16x16xf32, #tpu.memory_space<vmem>>, %arg2: memref<1x16xf32, #tpu.memory_space<vmem>>, %arg3: memref<16x8xf32, #tpu.memory_space<vmem>>, %arg4: memref<1x8xf32, #tpu.memory_space<vmem>>, %arg5: memref<12x8xf32, #tpu.memory_space<vmem>>, %arg6: memref<4x16xf32, #tpu.memory_space<vmem>>) attributes {dimension_semantics = [], scalar_prefetch = 0 : i64, scratch_operands = 0 : i64, tpu.core_type = #tpu.core_type<tc>} {
    %c0 = arith.constant 0 : index
    %c0_0 = arith.constant 0 : index
    %0 = vector.load %arg0[%c0, %c0_0] : memref<12x16xf32, #tpu.memory_space<vmem>>, vector<12x16xf32>
    %c0_1 = arith.constant 0 : index
    %c0_2 = arith.constant 0 : index
    %1 = vector.load %arg1[%c0_1, %c0_2] : memref<16x16xf32, #tpu.memory_space<vmem>>, vector<16x16xf32>
    %cst = arith.constant dense<0.000000e+00> : vector<12x16xf32>
    %2 = tpu.matmul %0, %1, %cst {dimension_numbers = #tpu.dot_dimension_numbers<[1], [0], [0], [1], [0, 0, 1, 1], [], []>} : vector<12x16xf32>, vector<16x16xf32>, vector<12x16xf32> -> vector<12x16xf32>
    %c0_3 = arith.constant 0 : index
    %c0_4 = arith.constant 0 : index
    %3 = vector.load %arg2[%c0_3, %c0_4] : memref<1x16xf32, #tpu.memory_space<vmem>>, vector<1x16xf32>
    %4 = vector.broadcast %3 : vector<1x16xf32> to vector<12x16xf32>
    %5 = arith.addf %2, %4 : vector<12x16xf32>
    %c0_5 = arith.constant 0 : index
    %c0_6 = arith.constant 0 : index
    %6 = vector.load %arg3[%c0_5, %c0_6] : memref<16x8xf32, #tpu.memory_space<vmem>>, vector<16x8xf32>
    %cst_7 = arith.constant dense<0.000000e+00> : vector<12x8xf32>
    %7 = tpu.matmul %5, %6, %cst_7 {dimension_numbers = #tpu.dot_dimension_numbers<[1], [0], [0], [1], [0, 0, 1, 1], [], []>} : vector<12x16xf32>, vector<16x8xf32>, vector<12x8xf32> -> vector<12x8xf32>
    %c0_8 = arith.constant 0 : index
    %c0_9 = arith.constant 0 : index
    %8 = vector.load %arg4[%c0_8, %c0_9] : memref<1x8xf32, #tpu.memory_space<vmem>>, vector<1x8xf32>
    %9 = vector.broadcast %8 : vector<1x8xf32> to vector<12x8xf32>
    %10 = arith.addf %7, %9 : vector<12x8xf32>
    %c0_10 = arith.constant 0 : index
    %c0_11 = arith.constant 0 : index
    %11 = vector.load %arg5[%c0_10, %c0_11] : memref<12x8xf32, #tpu.memory_space<vmem>>, vector<12x8xf32>
    tpu.vector_store %arg5[%c0_10, %c0_11], %10 {strides = array<i32>} : memref<12x8xf32, #tpu.memory_space<vmem>>, vector<12x8xf32>,
    %12 = vector.extract_strided_slice %5 {offsets = [0, 0], sizes = [4, 16], strides = [1, 1]} : vector<12x16xf32> to vector<4x16xf32>
    %c0_12 = arith.constant 0 : index
    %c0_13 = arith.constant 0 : index
    %13 = vector.load %arg6[%c0_12, %c0_13] : memref<4x16xf32, #tpu.memory_space<vmem>>, vector<4x16xf32>
    tpu.vector_store %arg6[%c0_12, %c0_13], %12 {strides = array<i32>} : memref<4x16xf32, #tpu.memory_space<vmem>>, vector<4x16xf32>,
    return
  }
}

</mosaic_0001>

<llo_original>
// kernel: tpu_custom_call.1
$region0: #{tpu_custom_call.1}
  #allocation0 [shape = 'u32[]', space=smem, size = 0x4, offset = 0x4, fixed_abs, tag = 'smem constant byte address 0x4 - core index']
  #allocation1 [shape = 'u32[144,128]{1,0:T(1,128)}', space=vmem, size = 0x12000, scoped, tag = 'internal scratch']
  %s0 = inlined_call_operand.vmem [shape: f32[12,16], index: 0, kind: input, shape index: {}]
  %s1 = inlined_call_operand.hbm [shape: f32[16,16], index: 1, kind: input, shape index: {}]
  %s2 = inlined_call_operand.vmem [shape: f32[1,16], index: 2, kind: input, shape index: {}]
  %s3 = inlined_call_operand.vmem [shape: f32[16,8], index: 3, kind: input, shape index: {}]
  %s4 = inlined_call_operand.vmem [shape: f32[1,8], index: 4, kind: input, shape index: {}]
  %s5 = inlined_call_operand.vmem [shape: f32[12,8], index: 5, kind: output, shape index: {0}]
  %s6 = inlined_call_operand.hbm [shape: f32[4,16], index: 6, kind: output, shape index: {1}]
  %7 = xla_tuple %s5, %s6
  %s8 = sld [smem:[#allocation0]]
  $region42: #{tpu_custom_call.1} parent=0
    _
  %s10 = ssub.s32 1, %s8
  %s11 = scalar_select 0, %s10, %s8
  $region1: #{tpu_custom_call.1} parent=0
    #allocation2 [shape = 'u8[8192]{0}', space=vmem, size = 0x2000, scoped, tag = 'input window, operand 1, single buffered']
    #allocation3 [shape = 's32[1]{0}', space=sflag, size = 0x4, scoped, tag = 'scoped memory for tpu_custom_call.1']
    #allocation4 [shape = 's32[1]{0}', space=sflag, size = 0x4, scoped, tag = 'scoped memory for tpu_custom_call.1']
    #allocation5 [shape = 'u8[2048]{0}', space=vmem, size = 0x800, scoped, tag = 'output window, operand 1, single buffered']
    %12 = vsyncpa [#allocation3], 0
    %13 = vsyncpa [#allocation4], 0
    // Predicated region
    $region2: #{tpu_custom_call.1} parent=1 // pred_check
      _
    $region3: #{tpu_custom_call.1} parent=1 // pred_check_branch
      %15 = sbr.rel (0) target = $region5
    $region4: #{tpu_custom_call.1} parent=1 // pred_region
      _
    $region5: #{tpu_custom_call.1} parent=1 // pred_fallthru
      _
    // Predicated region
    $region6: #{tpu_custom_call.1} parent=1 // pred_check
      _
    $region7: #{tpu_custom_call.1} parent=1 // pred_check_branch
      %17 = sbr.rel (0) target = $region9
    $region8: #{tpu_custom_call.1} parent=1 // pred_region
      %s19 = ssub.s32 256, 256
      %20 = vsyncadd [#allocation3], %s19
      %s21 = sshll.u32 [#allocation2], 4
      %s22 = int_to_ptr.vmem [resolvable:$true] %s21
      %27 = dma.hbm_to_vmem [thread:$0]  %s1, 256, %s22, [#allocation3], 128, 128, 8
    $region9: #{tpu_custom_call.1} parent=1 // pred_fallthru
      _
    // Predicated region
    $region10: #{tpu_custom_call.1} parent=1 // pred_check
      _
    $region11: #{tpu_custom_call.1} parent=1 // pred_check_branch
      %29 = sbr.rel (0) target = $region13
    $region12: #{tpu_custom_call.1} parent=1 // pred_region
      _
    $region13: #{tpu_custom_call.1} parent=1 // pred_fallthru
      _
    // Predicated region
    $region14: #{tpu_custom_call.1} parent=1 // pred_check
      _
    $region15: #{tpu_custom_call.1} parent=1 // pred_check_branch
      %31 = sbr.rel (0) target = $region17
    $region16: #{tpu_custom_call.1} parent=1 // pred_region
      _
    $region17: #{tpu_custom_call.1} parent=1 // pred_fallthru
      _
    // Predicated region
    $region18: #{tpu_custom_call.1} parent=1 // pred_check
      _
    $region19: #{tpu_custom_call.1} parent=1 // pred_check_branch
      %33 = sbr.rel (0) target = $region21
    $region20: #{tpu_custom_call.1} parent=1 // pred_region
      _
    $region21: #{tpu_custom_call.1} parent=1 // pred_fallthru
      _
    // Predicated region
    $region22: #{tpu_custom_call.1} parent=1 // pred_check
      _
    $region23: #{tpu_custom_call.1} parent=1 // pred_check_branch
      %35 = sbr.rel (0) target = $region25
    $region24: #{tpu_custom_call.1} parent=1 // pred_region
      %36 = dma.done [#allocation3], 256
    $region25: #{tpu_custom_call.1} parent=1 // pred_fallthru
      _
    %v37 = vld [vmem:[%s0] sm:$0xff]
    %v38 = vld [vmem:[%s0 + $0x8] sm:$0xf]
    %v39 = vld [vmem:[#allocation2] sm:$0xff]
    %v40 = vld [vmem:[#allocation2 + $0x8] sm:$0xff]
    %v41 = vld [vmem:[%s2] sm:$0x1]
    %v43 = vlaneseq
    %v44 = vshrl.u32 %v43, 7
    %v45 = vsub.s32 0, %v44
    %v46 = vrot.slane %v41, %v45
    %vm48 = vcmask 130048
    %v50 = vsel %vm48, %v37, 0
    %v53 = vsel %vm48, %v38, 0
    %55 = vmatprep.subr.mxu0 0.0
    %56 = vmatpush1.msra.mxu0 0.0
    %57 = vmatprep.subr.mxu0 0.0
    %58 = vmatpush1.msra.mxu0 0.0
    %59 = vmatprep.subr.mxu0 0.0
    %60 = vmatpush1.msra.mxu0 0.0
    %61 = vmatprep.subr.mxu0 0.0
    %62 = vmatpush1.msra.mxu0 0.0
    %63 = vmatprep.subr.mxu0 0.0
    %64 = vmatpush1.msra.mxu0 0.0
    %65 = vmatprep.subr.mxu0 0.0
    %66 = vmatpush1.msra.mxu0 0.0
    %67 = vmatprep.subr.mxu0 0.0
    %68 = vmatpush1.msra.mxu0 0.0
    %69 = vmatprep.subr.mxu0 0.0
    %70 = vmatpush1.msra.mxu0 0.0
    %71 = vmatprep.subr.mxu0 0.0
    %72 = vmatpush1.msra.mxu0 0.0
    %73 = vmatprep.subr.mxu0 0.0
    %74 = vmatpush1.msra.mxu0 0.0
    %75 = vmatprep.subr.mxu0 0.0
    %76 = vmatpush1.msra.mxu0 0.0
    %77 = vmatprep.subr.mxu0 0.0
    %78 = vmatpush1.msra.mxu0 0.0
    %79 = vmatprep.subr.mxu0 0.0
    %80 = vmatpush1.msra.mxu0 0.0
    %81 = vmatprep.subr.mxu0 0.0
    %82 = vmatpush1.msra.mxu0 0.0
    %83 = vmatprep.subr.mxu0 0.0
    %84 = vmatpush1.msra.mxu0 %v40
    %85 = vmatprep.subr.mxu0 0.0
    %86 = vmatpush1.msra.mxu0 %v39
    %87 = vmatprep.subr.mxu0 0.0
    %88 = vmatpush2.msra.mxu0 0.0
    %89 = vmatprep.subr.mxu0 0.0
    %90 = vmatpush2.msra.mxu0 0.0
    %91 = vmatprep.subr.mxu0 0.0
    %92 = vmatpush2.msra.mxu0 0.0
    %93 = vmatprep.subr.mxu0 0.0
    %94 = vmatpush2.msra.mxu0 0.0
    %95 = vmatprep.subr.mxu0 0.0
    %96 = vmatpush2.msra.mxu0 0.0
    %97 = vmatprep.subr.mxu0 0.0
    %98 = vmatpush2.msra.mxu0 0.0
    %99 = vmatprep.subr.mxu0 0.0
    %100 = vmatpush2.msra.mxu0 0.0
    %101 = vmatprep.subr.mxu0 0.0
    %102 = vmatpush2.msra.mxu0 0.0
    %103 = vmatprep.subr.mxu0 0.0
    %104 = vmatpush2.msra.mxu0 0.0
    %105 = vmatprep.subr.mxu0 0.0
    %106 = vmatpush2.msra.mxu0 0.0
    %107 = vmatprep.subr.mxu0 0.0
    %108 = vmatpush2.msra.mxu0 0.0
    %109 = vmatprep.subr.mxu0 0.0
    %110 = vmatpush2.msra.mxu0 0.0
    %111 = vmatprep.subr.mxu0 0.0
    %112 = vmatpush2.msra.mxu0 0.0
    %113 = vmatprep.subr.mxu0 0.0
    %114 = vmatpush2.msra.mxu0 0.0
    %115 = vmatprep.subr.mxu0 0.0
    %116 = vmatpush2.msra.mxu0 0.0
    %117 = vmatprep.subr.mxu0 0.0
    %118 = vmatpush2.msra.mxu0 0.0
    %119 = vmatprep.mubr.f32.mxu0 0.0
    %120 = vmatmul.mubr.f32.gmra.mxu0 %v50
    %v121 = vpop.f32.mrf.mxu0
    %v122 = vadd.f32 %v46, %v121
    %v123 = vpop.f32.mrf.mxu0
    %124 = vmatprep.mubr.f32.mxu0 0.0
    %125 = vmatmul.mubr.f32.gmra.mxu0 %v53
    %v126 = vpop.f32.mrf.mxu0
    %v127 = vadd.f32 %v46, %v126
    %v128 = vpop.f32.mrf.mxu0
    %129 = vdwg.mxu0
    %v130 = vld [vmem:[%s3] sm:$0xff]
    %v131 = vld [vmem:[%s3 + $0x8] sm:$0xff]
    %v132 = vld [vmem:[%s4] sm:$0x1]
    %v134 = vlaneseq
    %v135 = vshrl.u32 %v134, 7
    %v136 = vsub.s32 0, %v135
    %v137 = vrot.slane %v132, %v136
    %v140 = vsel %vm48, %v122, 0
    %v143 = vsel %vm48, %v127, 0
    %145 = vmatprep.subr.mxu0 0.0
    %146 = vmatpush1.msra.mxu0 0.0
    %147 = vmatprep.subr.mxu0 0.0
    %148 = vmatpush1.msra.mxu0 0.0
    %149 = vmatprep.subr.mxu0 0.0
    %150 = vmatpush1.msra.mxu0 0.0
    %151 = vmatprep.subr.mxu0 0.0
    %152 = vmatpush1.msra.mxu0 0.0
    %153 = vmatprep.subr.mxu0 0.0
    %154 = vmatpush1.msra.mxu0 0.0
    %155 = vmatprep.subr.mxu0 0.0
    %156 = vmatpush1.msra.mxu0 0.0
    %157 = vmatprep.subr.mxu0 0.0
    %158 = vmatpush1.msra.mxu0 0.0
    %159 = vmatprep.subr.mxu0 0.0
    %160 = vmatpush1.msra.mxu0 0.0
    %161 = vmatprep.subr.mxu0 0.0
    %162 = vmatpush1.msra.mxu0 0.0
    %163 = vmatprep.subr.mxu0 0.0
    %164 = vmatpush1.msra.mxu0 0.0
    %165 = vmatprep.subr.mxu0 0.0
    %166 = vmatpush1.msra.mxu0 0.0
    %167 = vmatprep.subr.mxu0 0.0
    %168 = vmatpush1.msra.mxu0 0.0
    %169 = vmatprep.subr.mxu0 0.0
    %170 = vmatpush1.msra.mxu0 0.0
    %171 = vmatprep.subr.mxu0 0.0
    %172 = vmatpush1.msra.mxu0 0.0
    %173 = vmatprep.subr.mxu0 0.0
    %174 = vmatpush1.msra.mxu0 %v131
    %175 = vmatprep.subr.mxu0 0.0
    %176 = vmatpush1.msra.mxu0 %v130
    %177 = vmatprep.subr.mxu0 0.0
    %178 = vmatpush2.msra.mxu0 0.0
    %179 = vmatprep.subr.mxu0 0.0
    %180 = vmatpush2.msra.mxu0 0.0
    %181 = vmatprep.subr.mxu0 0.0
    %182 = vmatpush2.msra.mxu0 0.0
    %183 = vmatprep.subr.mxu0 0.0
    %184 = vmatpush2.msra.mxu0 0.0
    %185 = vmatprep.subr.mxu0 0.0
    %186 = vmatpush2.msra.mxu0 0.0
    %187 = vmatprep.subr.mxu0 0.0
    %188 = vmatpush2.msra.mxu0 0.0
    %189 = vmatprep.subr.mxu0 0.0
    %190 = vmatpush2.msra.mxu0 0.0
    %191 = vmatprep.subr.mxu0 0.0
    %192 = vmatpush2.msra.mxu0 0.0
    %193 = vmatprep.subr.mxu0 0.0
    %194 = vmatpush2.msra.mxu0 0.0
    %195 = vmatprep.subr.mxu0 0.0
    %196 = vmatpush2.msra.mxu0 0.0
    %197 = vmatprep.subr.mxu0 0.0
    %198 = vmatpush2.msra.mxu0 0.0
    %199 = vmatprep.subr.mxu0 0.0
    %200 = vmatpush2.msra.mxu0 0.0
    %201 = vmatprep.subr.mxu0 0.0
    %202 = vmatpush2.msra.mxu0 0.0
    %203 = vmatprep.subr.mxu0 0.0
    %204 = vmatpush2.msra.mxu0 0.0
    %205 = vmatprep.subr.mxu0 0.0
    %206 = vmatpush2.msra.mxu0 0.0
    %207 = vmatprep.subr.mxu0 0.0
    %208 = vmatpush2.msra.mxu0 0.0
    %209 = vmatprep.mubr.f32.mxu0 0.0
    %210 = vmatmul.mubr.f32.gmra.mxu0 %v140
    %v211 = vpop.f32.mrf.mxu0
    %v212 = vadd.f32 %v137, %v211
    %v213 = vpop.f32.mrf.mxu0
    %214 = vmatprep.mubr.f32.mxu0 0.0
    %215 = vmatmul.mubr.f32.gmra.mxu0 %v143
    %v216 = vpop.f32.mrf.mxu0
    %v217 = vadd.f32 %v137, %v216
    %v218 = vpop.f32.mrf.mxu0
    %219 = vdwg.mxu0
    %vm220 = vcmask 64512
    %221 = vst.msk [vmem:[%s5] sm:$0xff] %vm220, %v212
    %vm222 = vcmask 60416
    %223 = vst.msk [vmem:[%s5 + $0x8] sm:$0xf] %vm222, %v217
    %vm224 = vcmask 125952
    %225 = vst.msk [vmem:[#allocation5] sm:$0xf] %vm224, %v122
    // Predicated region
    $region26: #{tpu_custom_call.1} parent=1 // pred_check
      _
    $region27: #{tpu_custom_call.1} parent=1 // pred_check_branch
      %227 = sbr.rel (0) target = $region29
    $region28: #{tpu_custom_call.1} parent=1 // pred_region
      _
    $region29: #{tpu_custom_call.1} parent=1 // pred_fallthru
      _
    // Predicated region
    $region30: #{tpu_custom_call.1} parent=1 // pred_check
      _
    $region31: #{tpu_custom_call.1} parent=1 // pred_check_branch
      %229 = sbr.rel (0) target = $region33
    $region32: #{tpu_custom_call.1} parent=1 // pred_region
      %s231 = ssub.s32 64, 64
      %232 = vsyncadd [#allocation4], %s231
      %s234 = sshll.u32 [#allocation5], 4
      %s235 = int_to_ptr.vmem [resolvable:$true] %s234
      %237 = dma.vmem_to_hbm [thread:$0]  %s235, 64, %s6, [#allocation4]
    $region33: #{tpu_custom_call.1} parent=1 // pred_fallthru
      _
    // Predicated region
    $region34: #{tpu_custom_call.1} parent=1 // pred_check
      _
    $region35: #{tpu_custom_call.1} parent=1 // pred_check_branch
      %239 = sbr.rel (0) target = $region37
    $region36: #{tpu_custom_call.1} parent=1 // pred_region
      _
    $region37: #{tpu_custom_call.1} parent=1 // pred_fallthru
      _
    // Predicated region
    $region38: #{tpu_custom_call.1} parent=1 // pred_check
      _
    $region39: #{tpu_custom_call.1} parent=1 // pred_check_branch
      %241 = sbr.rel (0) target = $region41
    $region40: #{tpu_custom_call.1} parent=1 // pred_region
      %242 = dma.done [#allocation4], 64
    $region41: #{tpu_custom_call.1} parent=1 // pred_fallthru
      _
    %243 = vsyncpa [#allocation3], 1
    %244 = vsyncpa [#allocation4], 1

</llo_original>
